<compile_context>
chip_gen: v7x
topology: tpu7x:2x2x1
jax: 0.10.0
libtpu: 0.0.40
codegen_flags: <defaults>
</compile_context>

<pallas_src>
import functools

import jax
import jax.numpy as jnp
from jax.experimental import pallas as pl
from jax.experimental.pallas import tpu as pltpu


def _cdiv(a, b):
    return -(-a // b)


def _yolo_kernel(grid_ref, anch_ref, x_ref, o_ref, *, stride, group):
    """One grid step decodes a (group, no, hw_blk) tile.

    grid_ref: (2, hw_blk)       f32 resident — row 0 = grid_x, row 1 = grid_y
    anch_ref: (n_ba, 2, 1)      f32 resident — per-(batch, anchor) (w, h)
    x_ref:    (group, no, hw_blk)    raw activations
    o_ref:    (group, no, hw_blk) f32 decoded outputs
    """
    # One contiguous unmasked load + a single cast pass; slice in-register.
    xf = x_ref[...].astype(jnp.float32)
    s = jax.nn.sigmoid(xf)

    # Dominant write: one aligned full-tile store (covers rows 4: correctly).
    o_ref[...] = s

    # Overwrite only the 4 box rows (small masked stores; negligible).
    o_ref[:, 0:2, :] = (s[:, 0:2, :] + grid_ref[...]) * stride

    start = pl.multiple_of(pl.program_id(0) * group, group)
    a = anch_ref[pl.ds(start, group)]                       # (group, 2, 1)
    o_ref[:, 2:4, :] = jnp.exp(xf[:, 2:4, :]) * a


def _num_tensorcores():
    """2 TensorCores per chip on v7x, 1 on v4/v5e/v6e.  Safe fallback = 1."""
    try:
        kind = jax.devices()[0].device_kind.lower()
    except Exception:
        return 1
    return 2 if "v7" in kind else 1


def _pick_group(n_ba, per_pair_bytes, num_tc, target_bytes=8 << 20):
    """Largest divisor g of n_ba whose (input + output) block stays under
    target_bytes.  Only multi-TC chips keep the '>= 2*num_tc steps' constraint
    (so the 'parallel' axis can split evenly); 1-TC chips take bigger blocks."""
    best = 1
    for g in range(1, n_ba + 1):
        if n_ba % g:
            continue
        if g * per_pair_bytes > target_bytes:
            continue
        if num_tc >= 2 and n_ba >= 2 * num_tc and (n_ba // g) < 2 * num_tc:
            continue
        best = g
    return best


def yolo_forward(x, anchors, image_size, *, native_layout=False):
    """Inference-mode YOLO layer.  x: (bs, A*no, ny, nx) (NCHW)."""
    bs, ch, ny, nx = x.shape
    num_anchors = anchors.shape[0]
    no = ch // num_anchors
    stride = image_size // ny          # matches torch's integer `//`
    hw = ny * nx
    n_ba = bs * num_anchors
    in_bytes = x.dtype.itemsize        # bf16 producers DMA at half width

    # (bs, A*no, ny, nx) -> (bs*A, no, hw): pure reshape, no transpose/cast.
    xr = x.reshape(n_ba, no, hw)

    # grid-x / grid-y precomputed once; resident block inside the kernel.
    yv, xv = jnp.meshgrid(jnp.arange(ny), jnp.arange(nx), indexing="ij")
    gxy = jnp.stack([xv, yv], 0).reshape(2, hw).astype(jnp.float32)

    # Lane padding only for very small non-128-multiple maps; otherwise the
    # full-extent lane block is exempt from the 128 rule and we skip the extra
    # pad/depad HBM round trips entirely.
    pad = (-hw) % 128 if (hw % 128 and hw < 512) else 0
    hw_eff = hw + pad
    if pad:
        xr = jnp.pad(xr, ((0, 0), (0, 0), (0, pad)))
        gxy = jnp.pad(gxy, ((0, 0), (0, pad)))

    # per-(batch, anchor) (w, h) scales: one small resident VMEM block.
    anch = jnp.tile(anchors.astype(jnp.float32), (bs, 1)).reshape(n_ba, 2, 1)

    num_tc = _num_tensorcores()
    g = _pick_group(n_ba, no * hw_eff * (in_bytes + 4), num_tc)
    nba_steps = n_ba // g

    # Optional second 'parallel' axis over hw: balances the two v7x TCs when
    # n_ba is tiny and deepens the DMA pipeline.  Interior hw blocks must be
    # multiples of 128 (full-extent blocks are exempt).
    hw_blk, hw_steps = hw_eff, 1
    if num_tc >= 2 and nba_steps < 2 * num_tc and hw_eff >= 256:
        want = _cdiv(2 * num_tc, nba_steps)
        hw_blk = max(128, 128 * _cdiv(_cdiv(hw_eff, want), 128))
        hw_steps = _cdiv(hw_eff, hw_blk)
        if hw_steps == 1:
            hw_blk = hw_eff

    # Scoped-VMEM budget from the actual footprint (double-buffered blocks +
    # resident grid/anchor tiles), capped below v7x's 64 MiB/TC physical VMEM.
    in_blk = g * no * hw_blk * in_bytes
    out_blk = g * no * hw_blk * 4
    resident = 2 * hw_blk * 4 + n_ba * 8 * 128 * 4
    vmem_need = 2 * (in_blk + out_blk) + 2 * resident
    vmem_limit = int(min(48 << 20, max(vmem_need + (4 << 20), 32 << 20)))

    kernel = functools.partial(_yolo_kernel, stride=float(stride), group=g)

    out = pl.pallas_call(
        kernel,
        out_shape=jax.ShapeDtypeStruct((n_ba, no, hw_eff), jnp.float32),
        grid=(nba_steps, hw_steps),
        in_specs=[
            pl.BlockSpec((2, hw_blk), lambda i, j: (0, j)),          # grid coords
            pl.BlockSpec((n_ba, 2, 1), lambda i, j: (0, 0, 0)),      # anchors (resident)
            pl.BlockSpec((g, no, hw_blk), lambda i, j: (i, 0, j)),   # activations
        ],
        out_specs=pl.BlockSpec((g, no, hw_blk), lambda i, j: (i, 0, j)),
        compiler_params=pltpu.CompilerParams(
            dimension_semantics=("parallel", "parallel"),
            vmem_limit_bytes=vmem_limit),
    )(gxy, anch, xr)

    if pad:
        out = out[:, :, :hw]

    out = out.reshape(bs, num_anchors, no, ny, nx)
    if native_layout:
        # Kernel-native layout: avoids the extra HBM read+write of the permute
        # below when the downstream consumer (decode/NMS) can take it directly.
        return out
    # torch-parity layout: (bs, A, ny, nx, no) -> (bs, A*ny*nx, no)
    out = out.transpose(0, 1, 3, 4, 2)
    return out.reshape(bs, num_anchors * ny * nx, no)


def yolo_reference(x, anchors, image_size):
    """Pure-JAX reference mirroring the PyTorch forward (eval mode)."""
    bs, ch, ny, nx = x.shape
    num_anchors = anchors.shape[0]
    no = ch // num_anchors
    stride = image_size // ny
    xp = x.astype(jnp.float32).reshape(bs, num_anchors, no, ny, nx)
    xp = xp.transpose(0, 1, 3, 4, 2)                       # (bs, A, ny, nx, no)
    yv, xv = jnp.meshgrid(jnp.arange(ny), jnp.arange(nx), indexing="ij")
    grid = jnp.stack((xv, yv), 2).reshape(1, 1, ny, nx, 2).astype(jnp.float32)
    anchor_grid = anchors.astype(jnp.float32).reshape(1, num_anchors, 1, 1, 2)
    xy = (jax.nn.sigmoid(xp[..., 0:2]) + grid) * stride
    wh = jnp.exp(xp[..., 2:4]) * anchor_grid
    rest = jax.nn.sigmoid(xp[..., 4:])
    out = jnp.concatenate([xy, wh, rest], axis=-1)
    return out.reshape(bs, -1, no)


if __name__ == "__main__":
    # Small, module-consistent shapes:
    #   num_classes=2 -> no=7, 3 anchors -> 21 channels, 16x16 grid, image 64 -> stride 4
    bs, ny, nx = 2, 16, 16
    num_classes = 2
    anchors = jnp.asarray([(10.0, 13.0), (16.0, 30.0), (33.0, 23.0)],
                          dtype=jnp.float32)                    # (3, 2)
    num_anchors = anchors.shape[0]
    no = num_classes + 5
    image_size = 64

    key = jax.random.PRNGKey(0)
    x = jax.random.normal(key, (bs, num_anchors * no, ny, nx), dtype=jnp.float32)

    out = yolo_forward(x, anchors, image_size)
    out = jax.block_until_ready(out)

    ref = yolo_reference(x, anchors, image_size)
    assert out.shape == (bs, num_anchors * ny * nx, no), out.shape
    assert jnp.allclose(out, ref, rtol=1e-5, atol=1e-4), "mismatch vs reference"

    # TODO(synk): training-mode branch (raw permuted view + MSE/BCE losses) is
    # not part of the inference forward and is left to plain JAX.
    print("KERNEL_OK")
</pallas_src>

<mosaic_0001>
module attributes {stable_mosaic.version = 11 : i64} {
  func.func @_yolo_kernel(%arg0: i32, %arg1: i32, %arg2: memref<2x256xf32, #tpu.memory_space<vmem>>, %arg3: memref<6x2x1xf32, #tpu.memory_space<vmem>>, %arg4: memref<6x7x256xf32, #tpu.memory_space<vmem>>, %arg5: memref<6x7x256xf32, #tpu.memory_space<vmem>>) attributes {dimension_semantics = [#tpu.dimension_semantics<parallel>, #tpu.dimension_semantics<parallel>], iteration_bounds = array<i64: 1, 1>, scalar_prefetch = 0 : i64, scratch_operands = 0 : i64, tpu.core_type = #tpu.core_type<tc>, window_params = [{transform_indices = @transform_0, window_bounds = array<i64: 2, 256>}, {pipeline_mode = #tpu.pipeline_mode<synchronous>, transform_indices = @transform_1, window_bounds = array<i64: 6, 2, 1>}, {transform_indices = @transform_2, window_bounds = array<i64: 6, 7, 256>}, {transform_indices = @transform_3, window_bounds = array<i64: 6, 7, 256>}]} {
    %c0 = arith.constant 0 : index
    %c0_0 = arith.constant 0 : index
    %c0_1 = arith.constant 0 : index
    %0 = vector.load %arg4[%c0, %c0_0, %c0_1] : memref<6x7x256xf32, #tpu.memory_space<vmem>>, vector<6x7x256xf32>
    %1 = arith.negf %0 : vector<6x7x256xf32>
    %2 = math.exp %1 : vector<6x7x256xf32>
    %cst = arith.constant 1.000000e+00 : f32
    %3 = vector.broadcast %cst : f32 to vector<6x7x256xf32>
    %4 = arith.addf %3, %2 : vector<6x7x256xf32>
    %5 = arith.divf %3, %4 : vector<6x7x256xf32>
    %c0_2 = arith.constant 0 : index
    %c0_3 = arith.constant 0 : index
    %c0_4 = arith.constant 0 : index
    %6 = vector.load %arg5[%c0_2, %c0_3, %c0_4] : memref<6x7x256xf32, #tpu.memory_space<vmem>>, vector<6x7x256xf32>
    tpu.vector_store %arg5[%c0_2, %c0_3, %c0_4], %5 {strides = array<i32>} : memref<6x7x256xf32, #tpu.memory_space<vmem>>, vector<6x7x256xf32>,
    %7 = vector.extract_strided_slice %5 {offsets = [0, 0, 0], sizes = [6, 2, 256], strides = [1, 1, 1]} : vector<6x7x256xf32> to vector<6x2x256xf32>
    %c0_5 = arith.constant 0 : index
    %c0_6 = arith.constant 0 : index
    %8 = vector.load %arg2[%c0_5, %c0_6] : memref<2x256xf32, #tpu.memory_space<vmem>>, vector<2x256xf32>
    %9 = vector.shape_cast %8 : vector<2x256xf32> to vector<1x2x256xf32>
    %10 = vector.broadcast %9 : vector<1x2x256xf32> to vector<6x2x256xf32>
    %11 = arith.addf %7, %10 : vector<6x2x256xf32>
    %cst_7 = arith.constant 4.000000e+00 : f32
    %12 = vector.broadcast %cst_7 : f32 to vector<6x2x256xf32>
    %13 = arith.mulf %11, %12 : vector<6x2x256xf32>
    %c0_8 = arith.constant 0 : index
    %c0_9 = arith.constant 0 : index
    %c0_10 = arith.constant 0 : index
    %14 = vector.load %arg5[%c0_8, %c0_9, %c0_10] : memref<6x7x256xf32, #tpu.memory_space<vmem>>, vector<6x2x256xf32>
    tpu.vector_store %arg5[%c0_8, %c0_9, %c0_10], %13 {strides = array<i32>} : memref<6x7x256xf32, #tpu.memory_space<vmem>>, vector<6x2x256xf32>,
    %c6_i32 = arith.constant 6 : i32
    %15 = arith.muli %arg0, %c6_i32 : i32
    %16 = tpu.assume_multiple %15, 6 : i32
    %17 = arith.index_cast %16 : i32 to index
    %c0_11 = arith.constant 0 : index
    %c0_12 = arith.constant 0 : index
    %18 = vector.load %arg3[%17, %c0_11, %c0_12] : memref<6x2x1xf32, #tpu.memory_space<vmem>>, vector<6x2x1xf32>
    %19 = vector.extract_strided_slice %0 {offsets = [0, 2, 0], sizes = [6, 2, 256], strides = [1, 1, 1]} : vector<6x7x256xf32> to vector<6x2x256xf32>
    %20 = math.exp %19 : vector<6x2x256xf32>
    %21 = vector.broadcast %18 : vector<6x2x1xf32> to vector<6x2x256xf32>
    %22 = arith.mulf %20, %21 : vector<6x2x256xf32>
    %c0_13 = arith.constant 0 : index
    %c2 = arith.constant 2 : index
    %c0_14 = arith.constant 0 : index
    %23 = vector.load %arg5[%c0_13, %c2, %c0_14] : memref<6x7x256xf32, #tpu.memory_space<vmem>>, vector<6x2x256xf32>
    tpu.vector_store %arg5[%c0_13, %c2, %c0_14], %22 {strides = array<i32>} : memref<6x7x256xf32, #tpu.memory_space<vmem>>, vector<6x2x256xf32>,
    return
  }
  func.func @transform_0(%arg0: i32, %arg1: i32) -> (i32, i32) {
    %c0_i32 = arith.constant 0 : i32
    %c0_i32_0 = arith.constant 0 : i32
    return %c0_i32, %arg1 : i32, i32
  }
  func.func @transform_1(%arg0: i32, %arg1: i32) -> (i32, i32, i32) {
    %c0_i32 = arith.constant 0 : i32
    %c0_i32_0 = arith.constant 0 : i32
    %c0_i32_1 = arith.constant 0 : i32
    %c0_i32_2 = arith.constant 0 : i32
    return %c0_i32, %c0_i32_0, %c0_i32_1 : i32, i32, i32
  }
  func.func @transform_2(%arg0: i32, %arg1: i32) -> (i32, i32, i32) {
    %c0_i32 = arith.constant 0 : i32
    %c0_i32_0 = arith.constant 0 : i32
    return %arg0, %c0_i32, %arg1 : i32, i32, i32
  }
  func.func @transform_3(%arg0: i32, %arg1: i32) -> (i32, i32, i32) {
    %c0_i32 = arith.constant 0 : i32
    %c0_i32_0 = arith.constant 0 : i32
    return %arg0, %c0_i32, %arg1 : i32, i32, i32
  }
}

</mosaic_0001>

<llo_original>
// kernel: tpu_custom_call.1
$region0: #{tpu_custom_call.1}
  #allocation0 [shape = 'u32[]', space=smem, size = 0x4, offset = 0x4, fixed_abs, tag = 'smem constant byte address 0x4 - core index']
  #allocation1 [shape = 'u32[144,128]{1,0:T(1,128)}', space=vmem, size = 0x12000, scoped, tag = 'internal scratch']
  %s0 = inlined_call_operand.vmem [shape: f32[2,256], index: 0, kind: input, shape index: {}]
  %s1 = inlined_call_operand.vmem [shape: f32[6,2,1], index: 1, kind: input, shape index: {}]
  %s2 = inlined_call_operand.hbm [shape: f32[6,7,256], index: 2, kind: input, shape index: {}]
  %s3 = inlined_call_operand.hbm [shape: f32[6,7,256], index: 3, kind: output, shape index: {}]
  %s4 = sld [smem:[#allocation0]]
  $region26: #{tpu_custom_call.1} parent=0
    _
  %s6 = ssub.s32 1, %s4
  %s7 = scalar_select 0, %s6, %s4
  $region1: #{tpu_custom_call.1} parent=0
    #allocation2 [shape = 'u8[49152]{0}', space=vmem, size = 0xc000, scoped, tag = 'input window, operand 2, single buffered']
    #allocation3 [shape = 's32[1]{0}', space=sflag, size = 0x4, scoped, tag = 'scoped memory for tpu_custom_call.1']
    #allocation4 [shape = 's32[1]{0}', space=sflag, size = 0x4, scoped, tag = 'scoped memory for tpu_custom_call.1']
    #allocation5 [shape = 'u8[49152]{0}', space=vmem, size = 0xc000, scoped, tag = 'output window, operand 0, single buffered']
    %8 = vsyncpa [#allocation3], 0
    %9 = vsyncpa [#allocation4], 0
    // Predicated region
    $region2: #{tpu_custom_call.1} parent=1 // pred_check
      _
    $region3: #{tpu_custom_call.1} parent=1 // pred_check_branch
      %11 = sbr.rel (0) target = $region5
    $region4: #{tpu_custom_call.1} parent=1 // pred_region
      _
    $region5: #{tpu_custom_call.1} parent=1 // pred_fallthru
      _
    // Predicated region
    $region6: #{tpu_custom_call.1} parent=1 // pred_check
      _
    $region7: #{tpu_custom_call.1} parent=1 // pred_check_branch
      %13 = sbr.rel (0) target = $region9
    $region8: #{tpu_custom_call.1} parent=1 // pred_region
      _
    $region9: #{tpu_custom_call.1} parent=1 // pred_fallthru
      _
    // Predicated region
    $region10: #{tpu_custom_call.1} parent=1 // pred_check
      _
    $region11: #{tpu_custom_call.1} parent=1 // pred_check_branch
      %15 = sbr.rel (0) target = $region13
    $region12: #{tpu_custom_call.1} parent=1 // pred_region
      %s17 = ssub.s32 1536, 1536
      %18 = vsyncadd [#allocation3], %s17
      %s19 = sshll.u32 [#allocation2], 4
      %s20 = int_to_ptr.vmem [resolvable:$true] %s19
      %25 = dma.hbm_to_vmem [thread:$0]  %s2, 1536, %s20, [#allocation3], 256, 256, 16
    $region13: #{tpu_custom_call.1} parent=1 // pred_fallthru
      _
    // Predicated region
    $region14: #{tpu_custom_call.1} parent=1 // pred_check
      _
    $region15: #{tpu_custom_call.1} parent=1 // pred_check_branch
      %27 = sbr.rel (0) target = $region17
    $region16: #{tpu_custom_call.1} parent=1 // pred_region
      %28 = dma.done [#allocation3], 1536
    $region17: #{tpu_custom_call.1} parent=1 // pred_fallthru
      _
    %v29 = vld [vmem:[#allocation2] sm:$0x7f]
    %v30 = vld [vmem:[#allocation2 + $0x8] sm:$0x7f]
    %v31 = vld [vmem:[#allocation2 + $0x10] sm:$0x7f]
    %v32 = vld [vmem:[#allocation2 + $0x18] sm:$0x7f]
    %v33 = vld [vmem:[#allocation2 + $0x20] sm:$0x7f]
    %v34 = vld [vmem:[#allocation2 + $0x28] sm:$0x7f]
    %v35 = vld [vmem:[#allocation2 + $0x30] sm:$0x7f]
    %v36 = vld [vmem:[#allocation2 + $0x38] sm:$0x7f]
    %v37 = vld [vmem:[#allocation2 + $0x40] sm:$0x7f]
    %v38 = vld [vmem:[#allocation2 + $0x48] sm:$0x7f]
    %v39 = vld [vmem:[#allocation2 + $0x50] sm:$0x7f]
    %v40 = vld [vmem:[#allocation2 + $0x58] sm:$0x7f]
    %v41 = vxor.u32 %v29, 2147483648
    %v42 = vxor.u32 %v30, 2147483648
    %v43 = vxor.u32 %v31, 2147483648
    %v44 = vxor.u32 %v32, 2147483648
    %v45 = vxor.u32 %v33, 2147483648
    %v46 = vxor.u32 %v34, 2147483648
    %v47 = vxor.u32 %v35, 2147483648
    %v48 = vxor.u32 %v36, 2147483648
    %v49 = vxor.u32 %v37, 2147483648
    %v50 = vxor.u32 %v38, 2147483648
    %v51 = vxor.u32 %v39, 2147483648
    %v52 = vxor.u32 %v40, 2147483648
    %v53 = vmul.f32 %v41, 1.442695
    %v54 = vpow.pop %v53
    %v55 = vmul.f32 %v42, 1.442695
    %v56 = vpow.pop %v55
    %v57 = vmul.f32 %v43, 1.442695
    %v58 = vpow.pop %v57
    %v59 = vmul.f32 %v44, 1.442695
    %v60 = vpow.pop %v59
    %v61 = vmul.f32 %v45, 1.442695
    %v62 = vpow.pop %v61
    %v63 = vmul.f32 %v46, 1.442695
    %v64 = vpow.pop %v63
    %v65 = vmul.f32 %v47, 1.442695
    %v66 = vpow.pop %v65
    %v67 = vmul.f32 %v48, 1.442695
    %v68 = vpow.pop %v67
    %v69 = vmul.f32 %v49, 1.442695
    %v70 = vpow.pop %v69
    %v71 = vmul.f32 %v50, 1.442695
    %v72 = vpow.pop %v71
    %v73 = vmul.f32 %v51, 1.442695
    %v74 = vpow.pop %v73
    %v75 = vmul.f32 %v52, 1.442695
    %v76 = vpow.pop %v75
    %v77 = vadd.f32 %v54, 1.0
    %v78 = vadd.f32 %v56, 1.0
    %v79 = vadd.f32 %v58, 1.0
    %v80 = vadd.f32 %v60, 1.0
    %v81 = vadd.f32 %v62, 1.0
    %v82 = vadd.f32 %v64, 1.0
    %v83 = vadd.f32 %v66, 1.0
    %v84 = vadd.f32 %v68, 1.0
    %v85 = vadd.f32 %v70, 1.0
    %v86 = vadd.f32 %v72, 1.0
    %v87 = vadd.f32 %v74, 1.0
    %v88 = vadd.f32 %v76, 1.0
    %v89 = vrcp.pop %v77
    %v90 = vmul.f32 1.0, %v89
    %v91 = vrcp.pop %v78
    %v92 = vmul.f32 1.0, %v91
    %v93 = vrcp.pop %v79
    %v94 = vmul.f32 1.0, %v93
    %v95 = vrcp.pop %v80
    %v96 = vmul.f32 1.0, %v95
    %v97 = vrcp.pop %v81
    %v98 = vmul.f32 1.0, %v97
    %v99 = vrcp.pop %v82
    %v100 = vmul.f32 1.0, %v99
    %v101 = vrcp.pop %v83
    %v102 = vmul.f32 1.0, %v101
    %v103 = vrcp.pop %v84
    %v104 = vmul.f32 1.0, %v103
    %v105 = vrcp.pop %v85
    %v106 = vmul.f32 1.0, %v105
    %v107 = vrcp.pop %v86
    %v108 = vmul.f32 1.0, %v107
    %v109 = vrcp.pop %v87
    %v110 = vmul.f32 1.0, %v109
    %v111 = vrcp.pop %v88
    %v112 = vmul.f32 1.0, %v111
    %113 = vst [vmem:[#allocation5] sm:$0x7f] %v90
    %114 = vst [vmem:[#allocation5 + $0x8] sm:$0x7f] %v92
    %115 = vst [vmem:[#allocation5 + $0x10] sm:$0x7f] %v94
    %116 = vst [vmem:[#allocation5 + $0x18] sm:$0x7f] %v96
    %117 = vst [vmem:[#allocation5 + $0x20] sm:$0x7f] %v98
    %118 = vst [vmem:[#allocation5 + $0x28] sm:$0x7f] %v100
    %119 = vst [vmem:[#allocation5 + $0x30] sm:$0x7f] %v102
    %120 = vst [vmem:[#allocation5 + $0x38] sm:$0x7f] %v104
    %121 = vst [vmem:[#allocation5 + $0x40] sm:$0x7f] %v106
    %122 = vst [vmem:[#allocation5 + $0x48] sm:$0x7f] %v108
    %123 = vst [vmem:[#allocation5 + $0x50] sm:$0x7f] %v110
    %124 = vst [vmem:[#allocation5 + $0x58] sm:$0x7f] %v112
    %v125 = vld [vmem:[%s0] sm:$0xf]
    %v128 = vunpack.c.l.s4 1983009808
    %v129 = vunpack.c.0.s8 %v128
    %v130 = vlaneseq
    %v131 = vshrl.u32 %v130, 7
    %v132 = vsub.s32 %v129, %v131
    %v133 = vrot.slane %v125, %v132
    %v134 = vcombine.high %v133, %v133
    %v137 = vadd.f32 %v90, %v133
    %v138 = vadd.f32 %v92, %v134
    %v139 = vadd.f32 %v94, %v133
    %v140 = vadd.f32 %v96, %v134
    %v141 = vadd.f32 %v98, %v133
    %v142 = vadd.f32 %v100, %v134
    %v143 = vadd.f32 %v102, %v133
    %v144 = vadd.f32 %v104, %v134
    %v145 = vadd.f32 %v106, %v133
    %v146 = vadd.f32 %v108, %v134
    %v147 = vadd.f32 %v110, %v133
    %v148 = vadd.f32 %v112, %v134
    %v149 = vmul.f32 %v137, 4.0
    %v150 = vmul.f32 %v138, 4.0
    %v151 = vmul.f32 %v139, 4.0
    %v152 = vmul.f32 %v140, 4.0
    %v153 = vmul.f32 %v141, 4.0
    %v154 = vmul.f32 %v142, 4.0
    %v155 = vmul.f32 %v143, 4.0
    %v156 = vmul.f32 %v144, 4.0
    %v157 = vmul.f32 %v145, 4.0
    %v158 = vmul.f32 %v146, 4.0
    %v159 = vmul.f32 %v147, 4.0
    %v160 = vmul.f32 %v148, 4.0
    %161 = vst [vmem:[#allocation5] sm:$0x3] %v149
    %162 = vst [vmem:[#allocation5 + $0x8] sm:$0x3] %v150
    %163 = vst [vmem:[#allocation5 + $0x10] sm:$0x3] %v151
    %164 = vst [vmem:[#allocation5 + $0x18] sm:$0x3] %v152
    %165 = vst [vmem:[#allocation5 + $0x20] sm:$0x3] %v153
    %166 = vst [vmem:[#allocation5 + $0x28] sm:$0x3] %v154
    %167 = vst [vmem:[#allocation5 + $0x30] sm:$0x3] %v155
    %168 = vst [vmem:[#allocation5 + $0x38] sm:$0x3] %v156
    %169 = vst [vmem:[#allocation5 + $0x40] sm:$0x3] %v157
    %170 = vst [vmem:[#allocation5 + $0x48] sm:$0x3] %v158
    %171 = vst [vmem:[#allocation5 + $0x50] sm:$0x3] %v159
    %172 = vst [vmem:[#allocation5 + $0x58] sm:$0x3] %v160
    %s173 = smul.u32 0, 6
    %s174 = smul.u32 %s173, 2
    %s175 = scalar_lea.vmem %s1, %s174
    %v176 = vld [vmem:[%s175] sm:$0x3]
    %v177 = vld [vmem:[%s175 + $0x2] sm:$0x3]
    %v178 = vld [vmem:[%s175 + $0x4] sm:$0x3]
    %v179 = vld [vmem:[%s175 + $0x6] sm:$0x3]
    %v180 = vld [vmem:[%s175 + $0x8] sm:$0x3]
    %v181 = vld [vmem:[%s175 + $0xa] sm:$0x3]
    %v182 = vmul.f32 %v29, 1.442695
    %v183 = vpow.pop %v182
    %v184 = vmul.f32 %v30, 1.442695
    %v185 = vpow.pop %v184
    %v186 = vmul.f32 %v31, 1.442695
    %v187 = vpow.pop %v186
    %v188 = vmul.f32 %v32, 1.442695
    %v189 = vpow.pop %v188
    %v190 = vmul.f32 %v33, 1.442695
    %v191 = vpow.pop %v190
    %v192 = vmul.f32 %v34, 1.442695
    %v193 = vpow.pop %v192
    %v194 = vmul.f32 %v35, 1.442695
    %v195 = vpow.pop %v194
    %v196 = vmul.f32 %v36, 1.442695
    %v197 = vpow.pop %v196
    %v198 = vmul.f32 %v37, 1.442695
    %v199 = vpow.pop %v198
    %v200 = vmul.f32 %v38, 1.442695
    %v201 = vpow.pop %v200
    %v202 = vmul.f32 %v39, 1.442695
    %v203 = vpow.pop %v202
    %v204 = vmul.f32 %v40, 1.442695
    %v205 = vpow.pop %v204
    %207 = vset.pattern.permute.xlu0 0
    %208 = vperm.xlu0 %207, %v176
    %v209 = vpop.permute.xlu0 %208
    %211 = vset.pattern.permute.xlu0 0
    %212 = vperm.xlu0 %211, %v177
    %v213 = vpop.permute.xlu0 %212
    %215 = vset.pattern.permute.xlu0 0
    %216 = vperm.xlu0 %215, %v178
    %v217 = vpop.permute.xlu0 %216
    %219 = vset.pattern.permute.xlu0 0
    %220 = vperm.xlu0 %219, %v179
    %v221 = vpop.permute.xlu0 %220
    %223 = vset.pattern.permute.xlu0 0
    %224 = vperm.xlu0 %223, %v180
    %v225 = vpop.permute.xlu0 %224
    %227 = vset.pattern.permute.xlu0 0
    %228 = vperm.xlu0 %227, %v181
    %v229 = vpop.permute.xlu0 %228
    %v230 = vrot.slane %v209, 6
    %v231 = vrot.slane %v213, 6
    %v232 = vrot.slane %v217, 6
    %v233 = vrot.slane %v221, 6
    %v234 = vrot.slane %v225, 6
    %v235 = vrot.slane %v229, 6
    %v242 = vmul.f32 %v183, %v230
    %v243 = vmul.f32 %v185, %v230
    %v244 = vmul.f32 %v187, %v231
    %v245 = vmul.f32 %v189, %v231
    %v246 = vmul.f32 %v191, %v232
    %v247 = vmul.f32 %v193, %v232
    %v248 = vmul.f32 %v195, %v233
    %v249 = vmul.f32 %v197, %v233
    %v250 = vmul.f32 %v199, %v234
    %v251 = vmul.f32 %v201, %v234
    %v252 = vmul.f32 %v203, %v235
    %v253 = vmul.f32 %v205, %v235
    %254 = vst [vmem:[#allocation5] sm:$0xc] %v242
    %255 = vst [vmem:[#allocation5 + $0x8] sm:$0xc] %v243
    %256 = vst [vmem:[#allocation5 + $0x10] sm:$0xc] %v244
    %257 = vst [vmem:[#allocation5 + $0x18] sm:$0xc] %v245
    %258 = vst [vmem:[#allocation5 + $0x20] sm:$0xc] %v246
    %259 = vst [vmem:[#allocation5 + $0x28] sm:$0xc] %v247
    %260 = vst [vmem:[#allocation5 + $0x30] sm:$0xc] %v248
    %261 = vst [vmem:[#allocation5 + $0x38] sm:$0xc] %v249
    %262 = vst [vmem:[#allocation5 + $0x40] sm:$0xc] %v250
    %263 = vst [vmem:[#allocation5 + $0x48] sm:$0xc] %v251
    %264 = vst [vmem:[#allocation5 + $0x50] sm:$0xc] %v252
    %265 = vst [vmem:[#allocation5 + $0x58] sm:$0xc] %v253
    // Predicated region
    $region18: #{tpu_custom_call.1} parent=1 // pred_check
      _
    $region19: #{tpu_custom_call.1} parent=1 // pred_check_branch
      %267 = sbr.rel (0) target = $region21
    $region20: #{tpu_custom_call.1} parent=1 // pred_region
      %s269 = ssub.s32 1536, 1536
      %270 = vsyncadd [#allocation4], %s269
      %s271 = sshll.u32 [#allocation5], 4
      %s272 = int_to_ptr.vmem [resolvable:$true] %s271
      %277 = dma.vmem_to_hbm [thread:$0]  %s272, 1536, %s3, [#allocation4], 256, 256, 16
    $region21: #{tpu_custom_call.1} parent=1 // pred_fallthru
      _
    // Predicated region
    $region22: #{tpu_custom_call.1} parent=1 // pred_check
      _
    $region23: #{tpu_custom_call.1} parent=1 // pred_check_branch
      %279 = sbr.rel (0) target = $region25
    $region24: #{tpu_custom_call.1} parent=1 // pred_region
      %280 = dma.done [#allocation4], 1536
    $region25: #{tpu_custom_call.1} parent=1 // pred_fallthru
      _
    %281 = vsyncpa [#allocation3], 1
    %282 = vsyncpa [#allocation4], 1

</llo_original>
